<compile_context>
chip_gen: v7x
topology: tpu7x:2x2x1
jax: 0.10.0
libtpu: 0.0.40
codegen_flags: <defaults>
</compile_context>

<pallas_src>
import functools

import jax
import jax.numpy as jnp
from jax.experimental import pallas as pl
from jax.experimental.pallas import tpu as pltpu


_VMEM_LIMIT = 32 * 1024 * 1024      # safe on v5e/v6e (128 MiB) and v7x (64 MiB)
_X_BLOCK_BUDGET = 2 * 1024 * 1024   # ~2 MiB x-tile -> pass-2 footprint ~8 MiB


def _ceil_to(a, b):
    return -(-a // b) * b


def _choose_tiles(nc, l, itemsize):
    """Pick (r_blk, l_blk) for the (nc, l) lane-dense slab.

    l_blk: full L if <= 2048, else 2048 (multiple of 128); ragged tail is
           masked in-kernel (stats) / discarded on write (apply).
    r_blk: sublane-aligned for the streamed dtype (8 f32, 16 bf16, 32 int8),
           ~2 MiB x-block budget, capped at 512, and — when nc allows — sized
           so there are >= 2 row blocks (both v7x TensorCores engaged).
    """
    sub = max(8, 32 // itemsize)
    l_blk = l if l <= 2048 else 2048

    if nc <= sub:
        return nc, l_blk                            # single full-dim row block

    budget = max(sub, (_X_BLOCK_BUDGET // max(1, l_blk * itemsize)) // sub * sub)
    half = _ceil_to((nc + 1) // 2, sub)             # ~half of nc -> >=2 blocks
    r_blk = max(sub, min(budget, half, 512))
    return r_blk, l_blk


# ---------------- pass 1: per-row sum / sum-of-squares ----------------------
def _make_stats_kernel(l_true, l_blk):
    needs_mask = (l_true % l_blk) != 0              # static: only ragged L tiles

    def stats_kernel(x_ref, sum_ref, sumsq_ref):
        xb = x_ref[...].astype(jnp.float32)         # (r_blk, l_blk), f32 accum
        if needs_mask:
            lane = jax.lax.broadcasted_iota(jnp.int32, xb.shape, 1)
            valid = (pl.program_id(1) * l_blk + lane) < l_true
            xb = jnp.where(valid, xb, 0.0)
        ps = jnp.sum(xb, axis=1, keepdims=True)      # one cross-lane reduce/tile
        pss = jnp.sum(xb * xb, axis=1, keepdims=True)

        @pl.when(pl.program_id(1) == 0)
        def _():
            sum_ref[...] = ps
            sumsq_ref[...] = pss

        @pl.when(pl.program_id(1) > 0)
        def _():
            sum_ref[...] += ps
            sumsq_ref[...] += pss

    return stats_kernel


# ---------------- pass 2: streamed elementwise apply ------------------------
def _apply_kernel(x_ref, scale_ref, shift_ref, o_ref):
    xb = x_ref[...].astype(jnp.float32)
    o_ref[...] = (xb * scale_ref[...] + shift_ref[...]).astype(o_ref.dtype)


@functools.partial(jax.jit, static_argnames=("eps", "use_bn"))
def film_forward(x, cond, w, bias, *, eps=1e-5, use_bn=True):
    """x: (N, C, L), cond: (N, D), w: (D, 2C) (pre-transposed nn.Linear weight),
    bias: (2C,).  Returns (N, C, L) in x's dtype."""
    n, c, l = x.shape
    nc = n * c
    out_dtype = x.dtype

    # Tiny adaptor Linear + split into gamma/beta — plain XLA (a few hundred
    # FLOPs; a dedicated pallas_call here only adds launch/staging overhead).
    gb = jnp.dot(cond.astype(jnp.float32), w.astype(jnp.float32),
                 preferred_element_type=jnp.float32) + bias.astype(jnp.float32)
    g = gb[:, :c]                                   # (N, C)
    b = gb[:, c:]                                   # (N, C)

    # Lane-dense view: rows = (n, c) pairs, lanes carry L (no HBM copy).
    x2 = x.reshape(nc, l)
    r_blk, l_blk = _choose_tiles(nc, l, x.dtype.itemsize)
    grid = (pl.cdiv(nc, r_blk), pl.cdiv(l, l_blk))

    if use_bn:
        # ---- pass 1: per-row sum / sumsq, streamed in native dtype ----
        row_sum, row_sumsq = pl.pallas_call(
            _make_stats_kernel(l, l_blk),
            out_shape=(jax.ShapeDtypeStruct((nc, 1), jnp.float32),
                       jax.ShapeDtypeStruct((nc, 1), jnp.float32)),
            grid=grid,
            in_specs=[pl.BlockSpec((r_blk, l_blk), lambda r, j: (r, j))],
            out_specs=(pl.BlockSpec((r_blk, 1), lambda r, j: (r, 0)),
                       pl.BlockSpec((r_blk, 1), lambda r, j: (r, 0))),
            compiler_params=pltpu.CompilerParams(
                dimension_semantics=("parallel", "arbitrary"),
                vmem_limit_bytes=_VMEM_LIMIT),
        )(x2)

        # ---- finalize in XLA: per-channel mean / rstd, per-(n,c) scale/shift
        count = float(n * l)
        chan_sum = jnp.sum(row_sum.reshape(n, c), axis=0)        # (C,)
        chan_sumsq = jnp.sum(row_sumsq.reshape(n, c), axis=0)    # (C,)
        mean = chan_sum / count
        # TODO(synk): E[x^2]-E[x]^2 in f32 can cancel when |mean| >> std over
        # very large N*L; a shifted / two-pass variance would be more robust.
        var = jnp.maximum(chan_sumsq / count - mean * mean, 0.0)
        rstd = jax.lax.rsqrt(var + eps)                          # (C,)
        scale = g * rstd[None, :]                                # (N, C)
        shift = b - mean[None, :] * scale                        # (N, C)
    else:
        scale, shift = g, b

    scale2 = scale.reshape(nc, 1)
    shift2 = shift.reshape(nc, 1)

    # ---- pass 2: streamed elementwise out = x * scale + shift ----
    out2 = pl.pallas_call(
        _apply_kernel,
        out_shape=jax.ShapeDtypeStruct((nc, l), out_dtype),
        grid=grid,
        in_specs=[pl.BlockSpec((r_blk, l_blk), lambda r, j: (r, j)),
                  pl.BlockSpec((r_blk, 1), lambda r, j: (r, 0)),
                  pl.BlockSpec((r_blk, 1), lambda r, j: (r, 0))],
        out_specs=pl.BlockSpec((r_blk, l_blk), lambda r, j: (r, j)),
        compiler_params=pltpu.CompilerParams(
            dimension_semantics=("parallel", "parallel"),
            vmem_limit_bytes=_VMEM_LIMIT),
    )(x2, scale2, shift2)

    return out2.reshape(n, c, l)


def film_reference(x, cond, w, bias, eps=1e-5):
    """Pure-JAX reference mirroring the PyTorch module (train-mode BN)."""
    gb = cond.astype(jnp.float32) @ w.astype(jnp.float32) + bias.astype(jnp.float32)
    c = x.shape[1]
    g = gb[:, :c][:, :, None]
    b = gb[:, c:][:, :, None]
    xf = x.astype(jnp.float32)
    mean = jnp.mean(xf, axis=(0, 2), keepdims=True)
    var = jnp.mean((xf - mean) ** 2, axis=(0, 2), keepdims=True)
    x_norm = (xf - mean) / jnp.sqrt(var + eps)
    return (x_norm * g + b).astype(x.dtype)


# TODO(synk): BatchNorm1d running_mean/running_var buffer updates (a training-
# time side effect in PyTorch) are not materialized; they do not affect the
# returned tensor.

if __name__ == "__main__":
    N, C, L, COND_DIM = 2, 4, 16, 3

    key = jax.random.PRNGKey(0)
    kx, kc, kw, kb = jax.random.split(key, 4)

    x = jax.random.normal(kx, (N, C, L), dtype=jnp.float32)
    cond_in = jax.random.normal(kc, (N, COND_DIM), dtype=jnp.float32)
    # PyTorch stores the adaptor weight as (2*C, cond_dim); kept pre-transposed.
    w = jax.random.normal(kw, (COND_DIM, 2 * C), dtype=jnp.float32) * 0.1
    bias = jax.random.normal(kb, (2 * C,), dtype=jnp.float32) * 0.1

    out = jax.block_until_ready(film_forward(x, cond_in, w, bias))
    ref = film_reference(x, cond_in, w, bias)

    assert out.shape == (N, C, L)
    assert out.dtype == x.dtype
    assert jnp.allclose(out, ref, atol=1e-4, rtol=1e-4), "mismatch vs reference"

    print("KERNEL_OK")
</pallas_src>

<mosaic_0001>
module attributes {stable_mosaic.version = 11 : i64} {
  func.func @stats_kernel(%arg0: i32, %arg1: i32, %arg2: memref<8x16xf32, #tpu.memory_space<vmem>>, %arg3: memref<8x1xf32, #tpu.memory_space<vmem>>, %arg4: memref<8x1xf32, #tpu.memory_space<vmem>>) attributes {dimension_semantics = [#tpu.dimension_semantics<parallel>, #tpu.dimension_semantics<arbitrary>], iteration_bounds = array<i64: 1, 1>, scalar_prefetch = 0 : i64, scratch_operands = 0 : i64, tpu.core_type = #tpu.core_type<tc>, window_params = [{transform_indices = @transform_0, window_bounds = array<i64: 8, 16>}, {transform_indices = @transform_1, window_bounds = array<i64: 8, 1>}, {transform_indices = @transform_2, window_bounds = array<i64: 8, 1>}]} {
    %c0 = arith.constant 0 : index
    %c0_0 = arith.constant 0 : index
    %0 = vector.load %arg2[%c0, %c0_0] : memref<8x16xf32, #tpu.memory_space<vmem>>, vector<8x16xf32>
    %cst = arith.constant dense<0.000000e+00> : vector<8xf32>
    %1 = vector.multi_reduction <add>, %0, %cst [1] : vector<8x16xf32> to vector<8xf32>
    %2 = vector.shape_cast %1 : vector<8xf32> to vector<8x1xf32>
    %3 = arith.mulf %0, %0 : vector<8x16xf32>
    %cst_1 = arith.constant dense<0.000000e+00> : vector<8xf32>
    %4 = vector.multi_reduction <add>, %3, %cst_1 [1] : vector<8x16xf32> to vector<8xf32>
    %5 = vector.shape_cast %4 : vector<8xf32> to vector<8x1xf32>
    %c0_i32 = arith.constant 0 : i32
    %6 = arith.cmpi eq, %arg1, %c0_i32 : i32
    %7 = arith.extui %6 : i1 to i32
    %c0_i32_2 = arith.constant 0 : i32
    %8 = arith.cmpi ne, %7, %c0_i32_2 : i32
    scf.if %8 {
      %c0_5 = arith.constant 0 : index
      %c0_6 = arith.constant 0 : index
      %12 = vector.load %arg3[%c0_5, %c0_6] : memref<8x1xf32, #tpu.memory_space<vmem>>, vector<8x1xf32>
      tpu.vector_store %arg3[%c0_5, %c0_6], %2 {strides = array<i32>} : memref<8x1xf32, #tpu.memory_space<vmem>>, vector<8x1xf32>,
      %c0_7 = arith.constant 0 : index
      %c0_8 = arith.constant 0 : index
      %13 = vector.load %arg4[%c0_7, %c0_8] : memref<8x1xf32, #tpu.memory_space<vmem>>, vector<8x1xf32>
      tpu.vector_store %arg4[%c0_7, %c0_8], %5 {strides = array<i32>} : memref<8x1xf32, #tpu.memory_space<vmem>>, vector<8x1xf32>,
    } else {
    }
    %c0_i32_3 = arith.constant 0 : i32
    %9 = arith.cmpi sgt, %arg1, %c0_i32_3 : i32
    %10 = arith.extui %9 : i1 to i32
    %c0_i32_4 = arith.constant 0 : i32
    %11 = arith.cmpi ne, %10, %c0_i32_4 : i32
    scf.if %11 {
      %c0_5 = arith.constant 0 : index
      %c0_6 = arith.constant 0 : index
      %12 = vector.load %arg3[%c0_5, %c0_6] : memref<8x1xf32, #tpu.memory_space<vmem>>, vector<8x1xf32>
      %13 = arith.addf %12, %2 : vector<8x1xf32>
      %c0_7 = arith.constant 0 : index
      %c0_8 = arith.constant 0 : index
      %14 = vector.load %arg3[%c0_7, %c0_8] : memref<8x1xf32, #tpu.memory_space<vmem>>, vector<8x1xf32>
      tpu.vector_store %arg3[%c0_7, %c0_8], %13 {strides = array<i32>} : memref<8x1xf32, #tpu.memory_space<vmem>>, vector<8x1xf32>,
      %c0_9 = arith.constant 0 : index
      %c0_10 = arith.constant 0 : index
      %15 = vector.load %arg4[%c0_9, %c0_10] : memref<8x1xf32, #tpu.memory_space<vmem>>, vector<8x1xf32>
      %16 = arith.addf %15, %5 : vector<8x1xf32>
      %c0_11 = arith.constant 0 : index
      %c0_12 = arith.constant 0 : index
      %17 = vector.load %arg4[%c0_11, %c0_12] : memref<8x1xf32, #tpu.memory_space<vmem>>, vector<8x1xf32>
      tpu.vector_store %arg4[%c0_11, %c0_12], %16 {strides = array<i32>} : memref<8x1xf32, #tpu.memory_space<vmem>>, vector<8x1xf32>,
    } else {
    }
    return
  }
  func.func @transform_0(%arg0: i32, %arg1: i32) -> (i32, i32) {
    %c0_i32 = arith.constant 0 : i32
    return %arg0, %arg1 : i32, i32
  }
  func.func @transform_1(%arg0: i32, %arg1: i32) -> (i32, i32) {
    %c0_i32 = arith.constant 0 : i32
    %c0_i32_0 = arith.constant 0 : i32
    return %arg0, %c0_i32 : i32, i32
  }
  func.func @transform_2(%arg0: i32, %arg1: i32) -> (i32, i32) {
    %c0_i32 = arith.constant 0 : i32
    %c0_i32_0 = arith.constant 0 : i32
    return %arg0, %c0_i32 : i32, i32
  }
}

module attributes {stable_mosaic.version = 11 : i64} {
  func.func @_apply_kernel(%arg0: i32, %arg1: i32, %arg2: memref<8x16xf32, #tpu.memory_space<vmem>>, %arg3: memref<8x1xf32, #tpu.memory_space<vmem>>, %arg4: memref<8x1xf32, #tpu.memory_space<vmem>>, %arg5: memref<8x16xf32, #tpu.memory_space<vmem>>) attributes {dimension_semantics = [#tpu.dimension_semantics<parallel>, #tpu.dimension_semantics<parallel>], iteration_bounds = array<i64: 1, 1>, scalar_prefetch = 0 : i64, scratch_operands = 0 : i64, tpu.core_type = #tpu.core_type<tc>, window_params = [{transform_indices = @transform_0, window_bounds = array<i64: 8, 16>}, {transform_indices = @transform_1, window_bounds = array<i64: 8, 1>}, {transform_indices = @transform_2, window_bounds = array<i64: 8, 1>}, {transform_indices = @transform_3, window_bounds = array<i64: 8, 16>}]} {
    %c0 = arith.constant 0 : index
    %c0_0 = arith.constant 0 : index
    %0 = vector.load %arg2[%c0, %c0_0] : memref<8x16xf32, #tpu.memory_space<vmem>>, vector<8x16xf32>
    %c0_1 = arith.constant 0 : index
    %c0_2 = arith.constant 0 : index
    %1 = vector.load %arg3[%c0_1, %c0_2] : memref<8x1xf32, #tpu.memory_space<vmem>>, vector<8x1xf32>
    %2 = vector.broadcast %1 : vector<8x1xf32> to vector<8x16xf32>
    %3 = arith.mulf %0, %2 : vector<8x16xf32>
    %c0_3 = arith.constant 0 : index
    %c0_4 = arith.constant 0 : index
    %4 = vector.load %arg4[%c0_3, %c0_4] : memref<8x1xf32, #tpu.memory_space<vmem>>, vector<8x1xf32>
    %5 = vector.broadcast %4 : vector<8x1xf32> to vector<8x16xf32>
    %6 = arith.addf %3, %5 : vector<8x16xf32>
    %c0_5 = arith.constant 0 : index
    %c0_6 = arith.constant 0 : index
    %7 = vector.load %arg5[%c0_5, %c0_6] : memref<8x16xf32, #tpu.memory_space<vmem>>, vector<8x16xf32>
    tpu.vector_store %arg5[%c0_5, %c0_6], %6 {strides = array<i32>} : memref<8x16xf32, #tpu.memory_space<vmem>>, vector<8x16xf32>,
    return
  }
  func.func @transform_0(%arg0: i32, %arg1: i32) -> (i32, i32) {
    %c0_i32 = arith.constant 0 : i32
    return %arg0, %arg1 : i32, i32
  }
  func.func @transform_1(%arg0: i32, %arg1: i32) -> (i32, i32) {
    %c0_i32 = arith.constant 0 : i32
    %c0_i32_0 = arith.constant 0 : i32
    return %arg0, %c0_i32 : i32, i32
  }
  func.func @transform_2(%arg0: i32, %arg1: i32) -> (i32, i32) {
    %c0_i32 = arith.constant 0 : i32
    %c0_i32_0 = arith.constant 0 : i32
    return %arg0, %c0_i32 : i32, i32
  }
  func.func @transform_3(%arg0: i32, %arg1: i32) -> (i32, i32) {
    %c0_i32 = arith.constant 0 : i32
    return %arg0, %arg1 : i32, i32
  }
}

</mosaic_0001>

<llo_original>
// kernel: film_forward.3
$region0: #{film_forward.3}
  #allocation0 [shape = 'u32[]', space=smem, size = 0x4, offset = 0x4, fixed_abs, tag = 'smem constant byte address 0x4 - core index']
  #allocation1 [shape = 'u32[144,128]{1,0:T(1,128)}', space=vmem, size = 0x12000, scoped, tag = 'internal scratch']
  %s0 = inlined_call_operand.vmem [shape: f32[8,16], index: 0, kind: input, shape index: {}]
  %s1 = inlined_call_operand.vmem [shape: f32[8,1], index: 1, kind: input, shape index: {}]
  %s2 = inlined_call_operand.vmem [shape: f32[8,1], index: 2, kind: input, shape index: {}]
  %s3 = inlined_call_operand.hbm [shape: f32[8,16], index: 3, kind: output, shape index: {}]
  %s4 = sld [smem:[#allocation0]]
  $region22: #{film_forward.3} parent=0
    _
  %s6 = ssub.s32 1, %s4
  %s7 = scalar_select 0, %s6, %s4
  $region1: #{film_forward.3} parent=0
    #allocation2 [shape = 'u8[4096]{0}', space=vmem, size = 0x1000, scoped, tag = 'output window, operand 0, single buffered']
    #allocation3 [shape = 's32[1]{0}', space=sflag, size = 0x4, scoped, tag = 'scoped memory for film_forward.3']
    %8 = vsyncpa [#allocation3], 0
    // Predicated region
    $region2: #{film_forward.3} parent=1 // pred_check
      _
    $region3: #{film_forward.3} parent=1 // pred_check_branch
      %10 = sbr.rel (0) target = $region5
    $region4: #{film_forward.3} parent=1 // pred_region
      _
    $region5: #{film_forward.3} parent=1 // pred_fallthru
      _
    // Predicated region
    $region6: #{film_forward.3} parent=1 // pred_check
      _
    $region7: #{film_forward.3} parent=1 // pred_check_branch
      %12 = sbr.rel (0) target = $region9
    $region8: #{film_forward.3} parent=1 // pred_region
      _
    $region9: #{film_forward.3} parent=1 // pred_fallthru
      _
    // Predicated region
    $region10: #{film_forward.3} parent=1 // pred_check
      _
    $region11: #{film_forward.3} parent=1 // pred_check_branch
      %14 = sbr.rel (0) target = $region13
    $region12: #{film_forward.3} parent=1 // pred_region
      _
    $region13: #{film_forward.3} parent=1 // pred_fallthru
      _
    %v15 = vld [vmem:[%s0] sm:$0xff]
    %v16 = vld [vmem:[%s1] sm:$0xff]
    %18 = vset.pattern.permute.xlu0 0
    %19 = vperm.xlu0 %18, %v16
    %v20 = vpop.permute.xlu0 %19
    %v22 = vmul.f32 %v15, %v20
    %v23 = vld [vmem:[%s2] sm:$0xff]
    %25 = vset.pattern.permute.xlu0 0
    %26 = vperm.xlu0 %25, %v23
    %v27 = vpop.permute.xlu0 %26
    %v29 = vadd.f32 %v22, %v27
    %vm30 = vcmask 130048
    %31 = vst.msk [vmem:[#allocation2] sm:$0xff] %vm30, %v29
    // Predicated region
    $region14: #{film_forward.3} parent=1 // pred_check
      _
    $region15: #{film_forward.3} parent=1 // pred_check_branch
      %33 = sbr.rel (0) target = $region17
    $region16: #{film_forward.3} parent=1 // pred_region
      %s35 = ssub.s32 128, 128
      %36 = vsyncadd [#allocation3], %s35
      %s38 = sshll.u32 [#allocation2], 4
      %s39 = int_to_ptr.vmem [resolvable:$true] %s38
      %41 = dma.vmem_to_hbm [thread:$0]  %s39, 128, %s3, [#allocation3]
    $region17: #{film_forward.3} parent=1 // pred_fallthru
      _
    // Predicated region
    $region18: #{film_forward.3} parent=1 // pred_check
      _
    $region19: #{film_forward.3} parent=1 // pred_check_branch
      %43 = sbr.rel (0) target = $region21
    $region20: #{film_forward.3} parent=1 // pred_region
      %44 = dma.done [#allocation3], 128
    $region21: #{film_forward.3} parent=1 // pred_fallthru
      _
    %45 = vsyncpa [#allocation3], 1

// kernel: film_forward.2
$region0: #{film_forward.2}
  #allocation0 [shape = 'u32[]', space=smem, size = 0x4, offset = 0x4, fixed_abs, tag = 'smem constant byte address 0x4 - core index']
  #allocation1 [shape = 'u32[144,128]{1,0:T(1,128)}', space=vmem, size = 0x12000, scoped, tag = 'internal scratch']
  %s0 = inlined_call_operand.vmem [shape: f32[8,16], index: 0, kind: input, shape index: {}]
  %s1 = inlined_call_operand.vmem [shape: f32[8,1], index: 1, kind: output, shape index: {0}]
  %s2 = inlined_call_operand.vmem [shape: f32[8,1], index: 2, kind: output, shape index: {1}]
  %3 = xla_tuple %s1, %s2
  %s4 = sld [smem:[#allocation0]]
  $region30: #{film_forward.2} parent=0
    _
  %s6 = ssub.s32 1, %s4
  %s7 = scalar_select 0, %s6, %s4
  // Predicated region
  $region2: #{film_forward.2} parent=0 // pred_check
    _
  $region3: #{film_forward.2} parent=0 // pred_check_branch
    %9 = sbr.rel (0) target = $region5
  $region4: #{film_forward.2} parent=0 // pred_region
    _
  $region5: #{film_forward.2} parent=0 // pred_fallthru
    _
  %v10 = vld [vmem:[%s0] sm:$0xff]
  %vm11 = vcmask 130048
  %v12 = vsel %vm11, %v10, 0.0
  %13 = vadd.xlane.f32.xlu0 %v12
  %v14 = vpop.xlane.xlu0 %13
  %v15 = vmul.f32 %v10, %v10
  %v16 = vsel %vm11, %v15, 0.0
  %17 = vadd.xlane.f32.xlu0 %v16
  %v18 = vpop.xlane.xlu0 %17
  %p19 = scmp.eq.s32.totalorder 0, 0
  // Predicated region
  $region6: #{film_forward.2} parent=0 // pred_check
    %p20 = pneg %p19
  $region7: #{film_forward.2} parent=0 // pred_check_branch
    %22 = sbr.rel (%p20) target = $region9
  $region8: #{film_forward.2} parent=0 // pred_region
    %vm23 = vcmask 7168
    %24 = vst.msk [vmem:[%s1] sm:$0xff] %vm23, %v14
    %25 = vst.msk [vmem:[%s2] sm:$0xff] %vm23, %v18
  $region9: #{film_forward.2} parent=0 // pred_fallthru
    _
  %p26 = scmp.gt.s32.totalorder 0, 0
  // Predicated region
  $region10: #{film_forward.2} parent=0 // pred_check
    %p27 = pneg %p26
  $region11: #{film_forward.2} parent=0 // pred_check_branch
    %29 = sbr.rel (%p27) target = $region13
  $region12: #{film_forward.2} parent=0 // pred_region
    %v30 = vld [vmem:[%s1] sm:$0xff]
    %v31 = vadd.f32 %v30, %v14
    %vm32 = vcmask 7168
    %33 = vst.msk [vmem:[%s1] sm:$0xff] %vm32, %v31
    %v34 = vld [vmem:[%s2] sm:$0xff]
    %v35 = vadd.f32 %v34, %v18
    %36 = vst.msk [vmem:[%s2] sm:$0xff] %vm32, %v35
  $region13: #{film_forward.2} parent=0 // pred_fallthru
    _
  // Predicated region
  $region14: #{film_forward.2} parent=0 // pred_check
    _
  $region15: #{film_forward.2} parent=0 // pred_check_branch
    %38 = sbr.rel (0) target = $region17
  $region16: #{film_forward.2} parent=0 // pred_region
    _
  $region17: #{film_forward.2} parent=0 // pred_fallthru
    _
  // Predicated region
  $region18: #{film_forward.2} parent=0 // pred_check
    _
  $region19: #{film_forward.2} parent=0 // pred_check_branch
    %40 = sbr.rel (0) target = $region21
  $region20: #{film_forward.2} parent=0 // pred_region
    _
  $region21: #{film_forward.2} parent=0 // pred_fallthru
    _
  // Predicated region
  $region22: #{film_forward.2} parent=0 // pred_check
    _
  $region23: #{film_forward.2} parent=0 // pred_check_branch
    %42 = sbr.rel (0) target = $region25
  $region24: #{film_forward.2} parent=0 // pred_region
    _
  $region25: #{film_forward.2} parent=0 // pred_fallthru
    _
  // Predicated region
  $region26: #{film_forward.2} parent=0 // pred_check
    _
  $region27: #{film_forward.2} parent=0 // pred_check_branch
    %44 = sbr.rel (0) target = $region29
  $region28: #{film_forward.2} parent=0 // pred_region
    _
  $region29: #{film_forward.2} parent=0 // pred_fallthru
    _

</llo_original>
